<compile_context>
chip_gen: v5e
topology: v5e:2x2
jax: 0.10.0
libtpu: 0.0.40
codegen_flags: <defaults>
</compile_context>

<pallas_src>
import math

import jax
import jax.numpy as jnp
from jax.experimental import pallas as pl
from jax.experimental.pallas import tpu as pltpu

_LANES = 128
_TB_MAX = 512  # rows per grid step: 512*128*4B = 256 KiB per input buffer


def _round_up(x, m):
    return -(-x // m) * m


def _make_wing_loss_kernel(w, epsilon, loss_weight, n_elems, tb):
    w = float(w)
    C = w - w * math.log(1.0 + w / float(epsilon))
    inv_eps = 1.0 / float(epsilon)          # keep the EUP slot free for log1p
    inv_n = float(loss_weight) / float(n_elems)
    n_chunks = tb // 8

    def kernel(pred_ref, target_ref, out_ref, acc_ref):
        @pl.when(pl.program_id(0) == 0)
        def _():
            acc_ref[...] = jnp.zeros_like(acc_ref)

        # Elementwise wing loss, processed in (8,128) vreg-shaped chunks so the
        # per-tile reduction is plain VPU adds (no XLU work until finalize).
        partial = jnp.zeros((8, _LANES), jnp.float32)
        for c in range(n_chunks):                       # static unroll
            p = pred_ref[c * 8:(c + 1) * 8, :].astype(jnp.float32)
            t = target_ref[c * 8:(c + 1) * 8, :].astype(jnp.float32)
            diff = jnp.abs(p - t)
            small = w * jnp.log1p(diff * inv_eps)       # only log1p hits the EUP
            large = diff - C
            partial = partial + jnp.where(diff < w, small, large)
        acc_ref[...] += partial

        @pl.when(pl.program_id(0) == pl.num_programs(0) - 1)
        def _():
            # Single cross-lane reduce at the very end; 'mean' + loss_weight.
            out_ref[0, 0] = jnp.sum(acc_ref[...]) * inv_n

    return kernel


def wing_loss_pallas(pred, target, *, w=10.0, epsilon=0.5, loss_weight=1.0):
    """Pallas WingLoss forward. Accepts f32 or bf16 pred/target; returns f32 scalar."""
    assert pred.shape == target.shape
    n_elems = math.prod(pred.shape)

    # Lane-dense relayout: flatten -> pad (zeros in BOTH inputs) -> (rows, 128).
    r0 = max(1, -(-n_elems // _LANES))
    num_tiles = -(-r0 // _TB_MAX)
    tb = _round_up(-(-r0 // num_tiles), 8)
    rows = num_tiles * tb
    pad = rows * _LANES - n_elems

    pred_f = pred.reshape(-1)
    target_f = target.reshape(-1)
    if pad:
        pred_f = jnp.pad(pred_f, (0, pad))
        target_f = jnp.pad(target_f, (0, pad))
    pred2 = pred_f.reshape(rows, _LANES)
    target2 = target_f.reshape(rows, _LANES)

    kernel = _make_wing_loss_kernel(w, epsilon, loss_weight, n_elems, tb)

    out = pl.pallas_call(
        kernel,
        out_shape=jax.ShapeDtypeStruct((1, 1), jnp.float32),
        grid_spec=pltpu.PrefetchScalarGridSpec(
            num_scalar_prefetch=0,
            grid=(num_tiles,),
            in_specs=[
                pl.BlockSpec((tb, _LANES), lambda i: (i, 0)),
                pl.BlockSpec((tb, _LANES), lambda i: (i, 0)),
            ],
            out_specs=pl.BlockSpec((1, 1), lambda i: (0, 0),
                                   memory_space=pltpu.SMEM),
            scratch_shapes=[pltpu.VMEM((8, _LANES), jnp.float32)],
        ),
        # Reduction axis -> 'arbitrary'. (On v7x, a 2-way 'parallel' core split
        # with per-core partial sums would ~halve wall time for very large B.)
        compiler_params=pltpu.CompilerParams(
            dimension_semantics=("arbitrary",),
        ),
    )(pred2, target2)
    return out[0, 0]


def wing_loss(pred, target, *, w=10.0, epsilon=0.5, loss_weight=1.0,
              use_pallas=True):
    """WingLoss.forward equivalent (reduction='mean', weight=None, avg_factor=None)."""
    # TODO(synk): optional per-element `weight` and `avg_factor` args of the
    # original forward() are not implemented (only the default None path).
    if not use_pallas:
        # Tiny inputs (e.g. documented Bx136 with small B) are overhead-dominated;
        # a plain fused jnp expression is preferable there.
        p = pred.astype(jnp.float32)
        t = target.astype(jnp.float32)
        diff = jnp.abs(p - t)
        C = w - w * math.log(1.0 + w / epsilon)
        elem = jnp.where(diff < w, w * jnp.log1p(diff / epsilon), diff - C)
        return loss_weight * jnp.mean(elem)
    return wing_loss_pallas(pred, target, w=w, epsilon=epsilon,
                            loss_weight=loss_weight)


if __name__ == "__main__":
    key = jax.random.PRNGKey(0)
    w, eps, lw = 10.0, 0.5, 1.0
    C = w - w * math.log(1.0 + w / eps)

    def ref_loss(p, t):
        p = p.astype(jnp.float32)
        t = t.astype(jnp.float32)
        d = jnp.abs(p - t)
        return lw * jnp.mean(jnp.where(d < w, w * jnp.log1p(d / eps), d - C))

    k1, k2, k3, k4 = jax.random.split(key, 4)

    # Test 1: documented small shape (B, 68*2), f32.
    B, D = 2, 68 * 2
    pred = jax.random.normal(k1, (B, D), dtype=jnp.float32) * 8.0
    target = jax.random.normal(k2, (B, D), dtype=jnp.float32) * 8.0
    loss = jax.block_until_ready(
        wing_loss(pred, target, w=w, epsilon=eps, loss_weight=lw))
    ref = ref_loss(pred, target)
    assert jnp.allclose(loss, ref, rtol=1e-5, atol=1e-5), (loss, ref)

    # Test 2: moderate batch, bf16 inputs (exercises lane-dense tiling,
    # multi-step accumulation, and the padding-contributes-zero path).
    B2 = 512
    pred2 = (jax.random.normal(k3, (B2, D), jnp.float32) * 8.0).astype(jnp.bfloat16)
    target2 = (jax.random.normal(k4, (B2, D), jnp.float32) * 8.0).astype(jnp.bfloat16)
    loss2 = jax.block_until_ready(
        wing_loss(pred2, target2, w=w, epsilon=eps, loss_weight=lw))
    ref2 = ref_loss(pred2, target2)
    assert jnp.allclose(loss2, ref2, rtol=1e-4, atol=1e-4), (loss2, ref2)

    print("KERNEL_OK")
</pallas_src>

<mosaic_0001>
module attributes {stable_mosaic.version = 11 : i64} {
  func.func @kernel(%arg0: i32, %arg1: memref<8x128xf32, #tpu.memory_space<vmem>>, %arg2: memref<8x128xf32, #tpu.memory_space<vmem>>, %arg3: memref<1x1xf32, #tpu.memory_space<smem>>, %arg4: memref<8x128xf32, #tpu.memory_space<vmem>>) attributes {dimension_semantics = [#tpu.dimension_semantics<arbitrary>], iteration_bounds = array<i64: 1>, scalar_prefetch = 0 : i64, scratch_operands = 1 : i64, tpu.core_type = #tpu.core_type<tc>, window_params = [{transform_indices = @transform_0, window_bounds = array<i64: 8, 128>}, {transform_indices = @transform_1, window_bounds = array<i64: 8, 128>}, {transform_indices = @transform_2, window_bounds = array<i64: 1, 1>}]} {
    %c0_i32 = arith.constant 0 : i32
    %0 = arith.cmpi eq, %arg0, %c0_i32 : i32
    %1 = arith.extui %0 : i1 to i32
    %c0_i32_0 = arith.constant 0 : i32
    %2 = arith.cmpi ne, %1, %c0_i32_0 : i32
    scf.if %2 {
      %cst_14 = arith.constant 0.000000e+00 : f32
      %25 = vector.broadcast %cst_14 : f32 to vector<8x128xf32>
      %c0_15 = arith.constant 0 : index
      %c0_16 = arith.constant 0 : index
      %26 = vector.load %arg4[%c0_15, %c0_16] : memref<8x128xf32, #tpu.memory_space<vmem>>, vector<8x128xf32>
      tpu.vector_store %arg4[%c0_15, %c0_16], %25 {strides = array<i32>} : memref<8x128xf32, #tpu.memory_space<vmem>>, vector<8x128xf32>,
    } else {
    }
    %cst = arith.constant 0.000000e+00 : f32
    %3 = vector.broadcast %cst : f32 to vector<8x128xf32>
    %c0 = arith.constant 0 : index
    %c0_1 = arith.constant 0 : index
    %4 = vector.load %arg1[%c0, %c0_1] : memref<8x128xf32, #tpu.memory_space<vmem>>, vector<8x128xf32>
    %c0_2 = arith.constant 0 : index
    %c0_3 = arith.constant 0 : index
    %5 = vector.load %arg2[%c0_2, %c0_3] : memref<8x128xf32, #tpu.memory_space<vmem>>, vector<8x128xf32>
    %6 = arith.subf %4, %5 : vector<8x128xf32>
    %7 = math.absf %6 : vector<8x128xf32>
    %cst_4 = arith.constant 2.000000e+00 : f32
    %8 = vector.broadcast %cst_4 : f32 to vector<8x128xf32>
    %9 = arith.mulf %7, %8 : vector<8x128xf32>
    %10 = math.log1p %9 : vector<8x128xf32>
    %cst_5 = arith.constant 1.000000e+01 : f32
    %11 = vector.broadcast %cst_5 : f32 to vector<8x128xf32>
    %12 = arith.mulf %11, %10 : vector<8x128xf32>
    %cst_6 = arith.constant -20.4452248 : f32
    %13 = vector.broadcast %cst_6 : f32 to vector<8x128xf32>
    %14 = arith.subf %7, %13 : vector<8x128xf32>
    %cst_7 = arith.constant 1.000000e+01 : f32
    %15 = vector.broadcast %cst_7 : f32 to vector<8x128xf32>
    %16 = arith.cmpf olt, %7, %15 : vector<8x128xf32>
    %17 = arith.select %16, %12, %14 : vector<8x128xi1>, vector<8x128xf32>
    %18 = arith.addf %3, %17 : vector<8x128xf32>
    %c0_8 = arith.constant 0 : index
    %c0_9 = arith.constant 0 : index
    %19 = vector.load %arg4[%c0_8, %c0_9] : memref<8x128xf32, #tpu.memory_space<vmem>>, vector<8x128xf32>
    %20 = arith.addf %19, %18 : vector<8x128xf32>
    %c0_10 = arith.constant 0 : index
    %c0_11 = arith.constant 0 : index
    %21 = vector.load %arg4[%c0_10, %c0_11] : memref<8x128xf32, #tpu.memory_space<vmem>>, vector<8x128xf32>
    tpu.vector_store %arg4[%c0_10, %c0_11], %20 {strides = array<i32>} : memref<8x128xf32, #tpu.memory_space<vmem>>, vector<8x128xf32>,
    %c0_i32_12 = arith.constant 0 : i32
    %22 = arith.cmpi eq, %arg0, %c0_i32_12 : i32
    %23 = arith.extui %22 : i1 to i32
    %c0_i32_13 = arith.constant 0 : i32
    %24 = arith.cmpi ne, %23, %c0_i32_13 : i32
    scf.if %24 {
      %c0_14 = arith.constant 0 : index
      %c0_15 = arith.constant 0 : index
      %25 = vector.load %arg4[%c0_14, %c0_15] : memref<8x128xf32, #tpu.memory_space<vmem>>, vector<8x128xf32>
      %26 = vector.shape_cast %25 : vector<8x128xf32> to vector<1x8x128xf32>
      %cst_16 = arith.constant dense<0.000000e+00> : vector<1xf32>
      %27 = vector.multi_reduction <add>, %26, %cst_16 [1, 2] : vector<1x8x128xf32> to vector<1xf32>
      %28 = vector.shape_cast %27 : vector<1xf32> to vector<1x1x1xf32>
      %29 = vector.extract %28[0, 0, 0] : f32 from vector<1x1x1xf32>
      %cst_17 = arith.constant 0.0036764706 : f32
      %30 = arith.mulf %29, %cst_17 : f32
      %c0_18 = arith.constant 0 : index
      %c0_19 = arith.constant 0 : index
      %31 = memref.load %arg3[%c0_18, %c0_19] : memref<1x1xf32, #tpu.memory_space<smem>>
      memref.store %30, %arg3[%c0_18, %c0_19] : memref<1x1xf32, #tpu.memory_space<smem>>
    } else {
    }
    return
  }
  func.func @transform_0(%arg0: i32) -> (i32, i32) {
    %c0_i32 = arith.constant 0 : i32
    %c0_i32_0 = arith.constant 0 : i32
    return %arg0, %c0_i32 : i32, i32
  }
  func.func @transform_1(%arg0: i32) -> (i32, i32) {
    %c0_i32 = arith.constant 0 : i32
    %c0_i32_0 = arith.constant 0 : i32
    return %arg0, %c0_i32 : i32, i32
  }
  func.func @transform_2(%arg0: i32) -> (i32, i32) {
    %c0_i32 = arith.constant 0 : i32
    %c0_i32_0 = arith.constant 0 : i32
    %c0_i32_1 = arith.constant 0 : i32
    return %c0_i32, %c0_i32_0 : i32, i32
  }
}

</mosaic_0001>

<llo_original>
// kernel: tpu_custom_call.1
$region0: #{tpu_custom_call.1}
  #allocation0 [shape = 'u32[]', space=smem, size = 0x4, offset = 0x4, fixed_abs, tag = 'smem constant byte address 0x4 - core index']
  #allocation1 [shape = 'u32[72,128]{1,0:T(1,128)}', space=vmem, size = 0x9000, scoped, tag = 'internal scratch']
  #allocation2 [shape = 'f32[8,128]{1,0:T(8,128)}', space=vmem, size = 0x1000, scoped, tag = 'scratch operand']
  %s0 = inlined_call_operand.hbm [shape: f32[8,128], index: 0, kind: input, shape index: {}]
  %s1 = inlined_call_operand.hbm [shape: f32[8,128], index: 1, kind: input, shape index: {}]
  %s2 = inlined_call_operand.hbm [shape: f32[1,1], index: 2, kind: output, shape index: {}]
  %s3 = sld [smem:[#allocation0]]
  $region34: #{tpu_custom_call.1} parent=0
    _
  %s5 = ssub.s32 1, %s3
  %s6 = scalar_select 0, %s5, %s3
  $region1: #{tpu_custom_call.1} parent=0
    #allocation3 [shape = 'u8[4096]{0}', space=vmem, size = 0x1000, scoped, tag = 'input window, operand 0, single buffered']
    #allocation4 [shape = 's32[1]{0}', space=sflag, size = 0x4, scoped, tag = 'scoped memory for tpu_custom_call.1']
    #allocation5 [shape = 's32[1]{0}', space=sflag, size = 0x4, scoped, tag = 'scoped memory for tpu_custom_call.1']
    #allocation6 [shape = 'u8[4096]{0}', space=vmem, size = 0x1000, scoped, tag = 'input window, operand 1, single buffered']
    #allocation7 [shape = 's32[1]{0}', space=sflag, size = 0x4, scoped, tag = 'scoped memory for tpu_custom_call.1']
    #allocation8 [shape = 'u8[512]{0}', space=smem, size = 0x200, scoped, tag = 'output window, operand 0, single buffered']
    %7 = vsyncpa [#allocation4], 0
    %8 = vsyncpa [#allocation7], 0
    %9 = vsyncpa [#allocation5], 0
    // Predicated region
    $region2: #{tpu_custom_call.1} parent=1 // pred_check
      _
    $region3: #{tpu_custom_call.1} parent=1 // pred_check_branch
      %11 = sbr.rel (0) target = $region5
    $region4: #{tpu_custom_call.1} parent=1 // pred_region
      %13 = vsyncadd [#allocation4], 0
      %s15 = sshll.u32 %s0, 4
      %s16 = int_to_ptr.hbm [resolvable:$true] %s15
      %s17 = sshll.u32 [#allocation3], 4
      %s18 = int_to_ptr.vmem [resolvable:$true] %s17
      %20 = dma.hbm_to_vmem [thread:$0]  %s16, 128, %s18, [#allocation4]
    $region5: #{tpu_custom_call.1} parent=1 // pred_fallthru
      _
    // Predicated region
    $region6: #{tpu_custom_call.1} parent=1 // pred_check
      _
    $region7: #{tpu_custom_call.1} parent=1 // pred_check_branch
      %22 = sbr.rel (0) target = $region9
    $region8: #{tpu_custom_call.1} parent=1 // pred_region
      %24 = vsyncadd [#allocation7], 0
      %s26 = sshll.u32 %s1, 4
      %s27 = int_to_ptr.hbm [resolvable:$true] %s26
      %s28 = sshll.u32 [#allocation6], 4
      %s29 = int_to_ptr.vmem [resolvable:$true] %s28
      %31 = dma.hbm_to_vmem [thread:$0]  %s27, 128, %s29, [#allocation7]
    $region9: #{tpu_custom_call.1} parent=1 // pred_fallthru
      _
    // Predicated region
    $region10: #{tpu_custom_call.1} parent=1 // pred_check
      _
    $region11: #{tpu_custom_call.1} parent=1 // pred_check_branch
      %33 = sbr.rel (0) target = $region13
    $region12: #{tpu_custom_call.1} parent=1 // pred_region
      %35 = dma.done [#allocation4], 128
    $region13: #{tpu_custom_call.1} parent=1 // pred_fallthru
      _
    // Predicated region
    $region14: #{tpu_custom_call.1} parent=1 // pred_check
      _
    $region15: #{tpu_custom_call.1} parent=1 // pred_check_branch
      %37 = sbr.rel (0) target = $region17
    $region16: #{tpu_custom_call.1} parent=1 // pred_region
      %39 = dma.done [#allocation7], 128
    $region17: #{tpu_custom_call.1} parent=1 // pred_fallthru
      _
    %p40 = scmp.eq.s32.totalorder 0, 0
    // Predicated region
    $region18: #{tpu_custom_call.1} parent=1 // pred_check
      %p41 = pneg %p40
    $region19: #{tpu_custom_call.1} parent=1 // pred_check_branch
      %43 = sbr.rel (%p41) target = $region21
    $region20: #{tpu_custom_call.1} parent=1 // pred_region
      %44 = vst [vmem:[#allocation2] sm:$0xff] 0.0
    $region21: #{tpu_custom_call.1} parent=1 // pred_fallthru
      _
    %v45 = vld [vmem:[#allocation3] sm:$0xff]
    %v46 = vld [vmem:[#allocation6] sm:$0xff]
    %v47 = vsub.f32 %v45, %v46
    %v48 = vand.u32 2147483647, %v47
    %v49 = vmul.f32 %v48, 2.0
    %v50 = vadd.f32 %v49, 1.0
    %v51 = vlog2.pop %v50
    %v52 = vmul.f32 %v51, 0.6931472
    %v53 = vmul.f32 -0.5, %v49
    %v54 = vadd.f32 %v53, 1.0
    %v55 = vmul.f32 %v54, %v49
    %v56 = vand.u32 2147483647, %v49
    %vm57 = vcmp.lt.f32.partialorder %v56, 0.0004427343
    %v58 = vsel %vm57, %v55, %v52
    %v59 = vmul.f32 %v58, 10.0
    %v60 = vsub.f32 %v48, -20.445225
    %vm61 = vcmp.lt.f32.partialorder %v48, 10.0
    %v62 = vsel %vm61, %v59, %v60
    %v63 = vadd.f32 %v62, 0.0
    %v64 = vld [vmem:[#allocation2] sm:$0xff]
    %v65 = vadd.f32 %v64, %v63
    %66 = vst [vmem:[#allocation2] sm:$0xff] %v65
    // Predicated region
    $region22: #{tpu_custom_call.1} parent=1 // pred_check
      %p67 = pneg %p40
    $region23: #{tpu_custom_call.1} parent=1 // pred_check_branch
      %69 = sbr.rel (%p67) target = $region25
    $region24: #{tpu_custom_call.1} parent=1 // pred_region
      %v70 = vld [vmem:[#allocation2] sm:$0xff]
      %71 = vadd.xlane.f32.xlu0 %v70
      %v72 = vpop.xlane.xlu0 %71
      %v73 = vrot.slane %v72, 4
      %v74 = vadd.f32 %v72, %v73
      %v75 = vrot.slane %v74, 2
      %v76 = vadd.f32 %v74, %v75
      %v77 = vrot.slane %v76, 1
      %v78 = vadd.f32 %v76, %v77
      %s79 = vtos %v78
      %s80 = smul.f32 %s79, 0.0036764706
      %s81 = scalar_lea.smem [#allocation8], 0
      %82 = sst [smem:[%s81]] %s80
    $region25: #{tpu_custom_call.1} parent=1 // pred_fallthru
      _
    // Predicated region
    $region26: #{tpu_custom_call.1} parent=1 // pred_check
      _
    $region27: #{tpu_custom_call.1} parent=1 // pred_check_branch
      %84 = sbr.rel (0) target = $region29
    $region28: #{tpu_custom_call.1} parent=1 // pred_region
      %86 = vsyncadd [#allocation5], 0
      %s88 = sshll.u32 %s2, 4
      %s89 = int_to_ptr.hbm [resolvable:$true] %s88
      %91 = dma.smem_to_hbm [#allocation8], 16, %s89, [#allocation5]
    $region29: #{tpu_custom_call.1} parent=1 // pred_fallthru
      _
    // Predicated region
    $region30: #{tpu_custom_call.1} parent=1 // pred_check
      _
    $region31: #{tpu_custom_call.1} parent=1 // pred_check_branch
      %93 = sbr.rel (0) target = $region33
    $region32: #{tpu_custom_call.1} parent=1 // pred_region
      %95 = dma.done [#allocation5], 16
    $region33: #{tpu_custom_call.1} parent=1 // pred_fallthru
      _
    %96 = sfence
    %97 = vsyncpa [#allocation4], 1
    %98 = vsyncpa [#allocation7], 1
    %99 = vsyncpa [#allocation5], 1

</llo_original>
